<compile_context>
chip_gen: v5e
topology: v5e:2x2
jax: 0.10.0
libtpu: 0.0.40
codegen_flags: <defaults>
</compile_context>

<pallas_src>
import functools

import jax
import jax.numpy as jnp
from jax.experimental import pallas as pl
from jax.experimental.pallas import tpu as pltpu


def _gce_kernel(logits_ref, targets_ref, out_ref, *, q, n, tn):
    i = pl.program_id(0)

    x = logits_ref[...]                                         # [TN, C] native dtype

    # Row-wise max and target-class logit in the native dtype (exact ops:
    # max returns an input element; the select sums one element vs zeros).
    m = jnp.max(x, axis=1, keepdims=True)                       # [TN, 1]
    t = targets_ref[...]                                        # [TN, 1] int32
    col = jax.lax.broadcasted_iota(jnp.int32, x.shape, 1)       # [TN, C]
    x_y = jnp.sum(jnp.where(col == t, x, jnp.zeros_like(x)),
                  axis=1, keepdims=True)                        # [TN, 1]

    # Stable row-wise logsumexp; upcast to f32 only inside the exp-sum pass.
    mf = m.astype(jnp.float32)
    lse = mf + jnp.log(
        jnp.sum(jnp.exp(x.astype(jnp.float32) - mf), axis=1, keepdims=True)
    )                                                           # [TN, 1]

    # p_y**q = exp(q * (x_y - logsumexp))  -- replaces pow() with one EUP exp.
    p_q = jnp.exp(jnp.float32(q) * (x_y.astype(jnp.float32) - lse))
    loss = (1.0 - p_q) * jnp.float32(1.0 / q)                   # [TN, 1]

    # Mask rows of a partial last tile (and any undefined padded data).
    row = i * tn + jax.lax.broadcasted_iota(jnp.int32, loss.shape, 0)
    loss = jnp.where(row < n, loss, 0.0)

    # Per-tile partial sum; final mean is done in the wrapper.
    out_ref[0, 0] = jnp.sum(loss)


def _vmem_capacity_bytes():
    """Physical VMEM of the current TPU generation, conservative fallback."""
    try:
        info = pltpu.get_tpu_info()
        cap = getattr(info, "vmem_capacity_bytes", None)
        if cap:
            return int(cap)
    except Exception:
        pass
    return 64 * 1024 * 1024          # v7x has the smallest VMEM (64 MiB)


def _pick_tile_rows(n, c, dtype):
    """Pick TN (rows per tile) and the scoped-VMEM limit to request.

    Per-step VMEM is budgeted as: 2x double-buffered input tile + ~one
    f32-sized working tile (the exp/intermediate pass), with headroom for
    the tiny targets tile / output block.
    """
    itemsize = jnp.dtype(dtype).itemsize

    # Sublane packing: rows per vreg for this dtype.
    if itemsize >= 4:
        row_align = 8
    elif itemsize == 2:
        row_align = 16
    else:
        row_align = 32

    vmem_phys = _vmem_capacity_bytes()
    # Request <= ~3/4 of physical VMEM: 48 MiB on v7x (64 MiB), 96 MiB on
    # v5e/v6e (128 MiB).  v5e's 16 MiB scoped default makes this load-bearing.
    vmem_limit = min((vmem_phys * 3) // 4, 96 * 1024 * 1024)

    # Max rows such that 2x input tile + 1x f32 working tile fits (80% use).
    per_row_bytes = c * (2 * itemsize + 4)
    usable = (vmem_limit * 4) // 5
    tn_vmem_cap = usable // max(1, per_row_bytes)

    # Target multi-MiB tiles (amortize ~0.35us/step): ~8 MiB on v7x,
    # up to 16 MiB on v5e/v6e, never below 2 MiB.
    target_tile_bytes = max(2 * 1024 * 1024, min(16 * 1024 * 1024, vmem_limit // 6))
    tn_target = target_tile_bytes // max(1, c * itemsize)

    n_rounded = ((n + 7) // 8) * 8
    tn = min(tn_vmem_cap, tn_target, n_rounded)

    if tn >= row_align:
        tn = (tn // row_align) * row_align
    else:
        tn = (tn // 8) * 8
    return max(8, int(tn)), int(vmem_limit)


def gce_loss(logits, targets, q):
    """logits: [N, C] float (f32/bf16); targets: [N] int. Returns scalar f32."""
    n, c = logits.shape
    targets2d = targets.astype(jnp.int32).reshape(n, 1)

    tn, vmem_limit = _pick_tile_rows(n, c, logits.dtype)
    num_tiles = pl.cdiv(n, tn)

    kernel = functools.partial(_gce_kernel, q=float(q), n=int(n), tn=int(tn))

    partials = pl.pallas_call(
        kernel,
        out_shape=jax.ShapeDtypeStruct((num_tiles, 1), jnp.float32),
        grid=(num_tiles,),
        in_specs=[
            pl.BlockSpec((tn, c), lambda i: (i, 0)),            # logits tile
            pl.BlockSpec((tn, 1), lambda i: (i, 0)),            # target ids tile
        ],
        out_specs=pl.BlockSpec((1, 1), lambda i: (i, 0),
                               memory_space=pltpu.SMEM),        # per-tile partial
        compiler_params=pltpu.CompilerParams(
            dimension_semantics=("parallel",),                  # shard tiles over TCs
            vmem_limit_bytes=vmem_limit,
        ),
    )(logits, targets2d)

    return jnp.sum(partials) * jnp.float32(1.0 / float(n))

# TODO(synk): for vocab-scale C where even an (8, C) tile exceeds the VMEM
# budget, add a second ("arbitrary") grid axis over C with an online max/sum
# carried in scratch before using such shapes.


def _reference(logits, targets, q):
    probs = jax.nn.softmax(logits.astype(jnp.float32), axis=1)
    p_correct = jnp.take_along_axis(probs, targets[:, None], axis=1)[:, 0]
    return jnp.mean((1.0 - jnp.power(p_correct, q)) / q)


if __name__ == "__main__":
    q = 0.7
    N, C = 8, 32
    key = jax.random.PRNGKey(0)
    k1, k2 = jax.random.split(key)
    logits = jax.random.normal(k1, (N, C), dtype=jnp.float32)
    targets = jax.random.randint(k2, (N,), 0, C, dtype=jnp.int32)

    loss = jax.block_until_ready(gce_loss(logits, targets, q))
    ref = jax.block_until_ready(_reference(logits, targets, q))
    assert jnp.allclose(loss, ref, rtol=1e-5, atol=1e-6), (loss, ref)

    # Second check: batch not a multiple of the tile / sublane size.
    N2, C2 = 37, 96
    k3, k4 = jax.random.split(k2)
    logits2 = jax.random.normal(k3, (N2, C2), dtype=jnp.float32)
    targets2 = jax.random.randint(k4, (N2,), 0, C2, dtype=jnp.int32)
    loss2 = jax.block_until_ready(gce_loss(logits2, targets2, q))
    ref2 = jax.block_until_ready(_reference(logits2, targets2, q))
    assert jnp.allclose(loss2, ref2, rtol=1e-5, atol=1e-6), (loss2, ref2)

    print("KERNEL_OK")
</pallas_src>

<mosaic_0001>
module attributes {stable_mosaic.version = 11 : i64} {
  func.func @_gce_kernel(%arg0: i32, %arg1: memref<8x32xf32, #tpu.memory_space<vmem>>, %arg2: memref<8x1xi32, #tpu.memory_space<vmem>>, %arg3: memref<1x1xf32, #tpu.memory_space<smem>>) attributes {dimension_semantics = [#tpu.dimension_semantics<parallel>], iteration_bounds = array<i64: 1>, scalar_prefetch = 0 : i64, scratch_operands = 0 : i64, tpu.core_type = #tpu.core_type<tc>, window_params = [{transform_indices = @transform_0, window_bounds = array<i64: 8, 32>}, {transform_indices = @transform_1, window_bounds = array<i64: 8, 1>}, {transform_indices = @transform_2, window_bounds = array<i64: 1, 1>}]} {
    %c0 = arith.constant 0 : index
    %c0_0 = arith.constant 0 : index
    %0 = vector.load %arg1[%c0, %c0_0] : memref<8x32xf32, #tpu.memory_space<vmem>>, vector<8x32xf32>
    %cst = arith.constant dense<0xFF800000> : vector<8xf32>
    %1 = vector.multi_reduction <maximumf>, %0, %cst [1] : vector<8x32xf32> to vector<8xf32>
    %2 = vector.shape_cast %1 : vector<8xf32> to vector<8x1xf32>
    %c0_1 = arith.constant 0 : index
    %c0_2 = arith.constant 0 : index
    %3 = vector.load %arg2[%c0_1, %c0_2] : memref<8x1xi32, #tpu.memory_space<vmem>>, vector<8x1xi32>
    %4 = tpu.iota {dimensions = array<i32: 1>} : vector<8x32xi32>
    %5 = vector.broadcast %3 : vector<8x1xi32> to vector<8x32xi32>
    %6 = arith.cmpi eq, %4, %5 : vector<8x32xi32>
    %cst_3 = arith.constant 0.000000e+00 : f32
    %7 = vector.broadcast %cst_3 : f32 to vector<8x32xf32>
    %8 = arith.select %6, %0, %7 : vector<8x32xi1>, vector<8x32xf32>
    %cst_4 = arith.constant dense<0.000000e+00> : vector<8xf32>
    %9 = vector.multi_reduction <add>, %8, %cst_4 [1] : vector<8x32xf32> to vector<8xf32>
    %10 = vector.shape_cast %9 : vector<8xf32> to vector<8x1xf32>
    %11 = vector.broadcast %2 : vector<8x1xf32> to vector<8x32xf32>
    %12 = arith.subf %0, %11 : vector<8x32xf32>
    %13 = math.exp %12 : vector<8x32xf32>
    %cst_5 = arith.constant dense<0.000000e+00> : vector<8xf32>
    %14 = vector.multi_reduction <add>, %13, %cst_5 [1] : vector<8x32xf32> to vector<8xf32>
    %15 = vector.shape_cast %14 : vector<8xf32> to vector<8x1xf32>
    %16 = math.log %15 : vector<8x1xf32>
    %17 = arith.addf %2, %16 : vector<8x1xf32>
    %18 = arith.subf %10, %17 : vector<8x1xf32>
    %cst_6 = arith.constant 0.699999988 : f32
    %19 = vector.broadcast %cst_6 : f32 to vector<8x1xf32>
    %20 = arith.mulf %19, %18 : vector<8x1xf32>
    %21 = math.exp %20 : vector<8x1xf32>
    %cst_7 = arith.constant 1.000000e+00 : f32
    %22 = vector.broadcast %cst_7 : f32 to vector<8x1xf32>
    %23 = arith.subf %22, %21 : vector<8x1xf32>
    %cst_8 = arith.constant 1.42857146 : f32
    %24 = vector.broadcast %cst_8 : f32 to vector<8x1xf32>
    %25 = arith.mulf %23, %24 : vector<8x1xf32>
    %c8_i32 = arith.constant 8 : i32
    %26 = arith.muli %arg0, %c8_i32 : i32
    %27 = tpu.iota {dimensions = array<i32: 0>} : vector<8x1xi32>
    %28 = vector.broadcast %26 : i32 to vector<8x1xi32>
    %29 = arith.addi %28, %27 : vector<8x1xi32>
    %c8_i32_9 = arith.constant 8 : i32
    %30 = vector.broadcast %c8_i32_9 : i32 to vector<8x1xi32>
    %31 = arith.cmpi slt, %29, %30 : vector<8x1xi32>
    %cst_10 = arith.constant 0.000000e+00 : f32
    %32 = vector.broadcast %cst_10 : f32 to vector<8x1xf32>
    %33 = arith.select %31, %25, %32 : vector<8x1xi1>, vector<8x1xf32>
    %34 = vector.shape_cast %33 : vector<8x1xf32> to vector<1x8x1xf32>
    %cst_11 = arith.constant dense<0.000000e+00> : vector<1xf32>
    %35 = vector.multi_reduction <add>, %34, %cst_11 [1, 2] : vector<1x8x1xf32> to vector<1xf32>
    %36 = vector.shape_cast %35 : vector<1xf32> to vector<1x1x1xf32>
    %37 = vector.extract %36[0, 0, 0] : f32 from vector<1x1x1xf32>
    %c0_12 = arith.constant 0 : index
    %c0_13 = arith.constant 0 : index
    %38 = memref.load %arg3[%c0_12, %c0_13] : memref<1x1xf32, #tpu.memory_space<smem>>
    memref.store %37, %arg3[%c0_12, %c0_13] : memref<1x1xf32, #tpu.memory_space<smem>>
    return
  }
  func.func @transform_0(%arg0: i32) -> (i32, i32) {
    %c0_i32 = arith.constant 0 : i32
    %c0_i32_0 = arith.constant 0 : i32
    return %arg0, %c0_i32 : i32, i32
  }
  func.func @transform_1(%arg0: i32) -> (i32, i32) {
    %c0_i32 = arith.constant 0 : i32
    %c0_i32_0 = arith.constant 0 : i32
    return %arg0, %c0_i32 : i32, i32
  }
  func.func @transform_2(%arg0: i32) -> (i32, i32) {
    %c0_i32 = arith.constant 0 : i32
    %c0_i32_0 = arith.constant 0 : i32
    return %arg0, %c0_i32 : i32, i32
  }
}

</mosaic_0001>

<llo_original>
// kernel: tpu_custom_call.1
$region0: #{tpu_custom_call.1}
  #allocation0 [shape = 'u32[]', space=smem, size = 0x4, offset = 0x4, fixed_abs, tag = 'smem constant byte address 0x4 - core index']
  #allocation1 [shape = 'u32[72,128]{1,0:T(1,128)}', space=vmem, size = 0x9000, scoped, tag = 'internal scratch']
  %s0 = inlined_call_operand.vmem [shape: f32[8,32], index: 0, kind: input, shape index: {}]
  %s1 = inlined_call_operand.vmem [shape: s32[8,1], index: 1, kind: input, shape index: {}]
  %s2 = inlined_call_operand.hbm [shape: f32[1,1], index: 2, kind: output, shape index: {}]
  %s3 = sld [smem:[#allocation0]]
  $region18: #{tpu_custom_call.1} parent=0
    _
  %s5 = ssub.s32 1, %s3
  %s6 = scalar_select 0, %s5, %s3
  $region1: #{tpu_custom_call.1} parent=0
    #allocation2 [shape = 'u8[512]{0}', space=smem, size = 0x200, scoped, tag = 'output window, operand 0, single buffered']
    #allocation3 [shape = 's32[1]{0}', space=sflag, size = 0x4, scoped, tag = 'scoped memory for tpu_custom_call.1']
    %7 = vsyncpa [#allocation3], 0
    // Predicated region
    $region2: #{tpu_custom_call.1} parent=1 // pred_check
      _
    $region3: #{tpu_custom_call.1} parent=1 // pred_check_branch
      %9 = sbr.rel (0) target = $region5
    $region4: #{tpu_custom_call.1} parent=1 // pred_region
      _
    $region5: #{tpu_custom_call.1} parent=1 // pred_fallthru
      _
    // Predicated region
    $region6: #{tpu_custom_call.1} parent=1 // pred_check
      _
    $region7: #{tpu_custom_call.1} parent=1 // pred_check_branch
      %11 = sbr.rel (0) target = $region9
    $region8: #{tpu_custom_call.1} parent=1 // pred_region
      _
    $region9: #{tpu_custom_call.1} parent=1 // pred_fallthru
      _
    %v12 = vld [vmem:[%s0] sm:$0xff]
    %vm13 = vcmask 261120
    %v14 = vsel %vm13, %v12, -inf
    %15 = vmax.xlane.f32.xlu0 %v14
    %v16 = vpop.xlane.xlu0 %15
    %v17 = vld [vmem:[%s1] sm:$0xff]
    %v18 = vlaneseq
    %v19 = vand.u32 %v18, 127
    %20 = vset.pattern.permute.xlu0 0
    %21 = vperm.xlu0 %20, %v17
    %v22 = vpop.permute.xlu0 %21
    %vm23 = vcmp.eq.s32.totalorder %v19, %v22
    %v24 = vsel %vm23, %v12, 0.0
    %v25 = vsel %vm13, %v24, 0.0
    %26 = vadd.xlane.f32.xlu0 %v25
    %v27 = vpop.xlane.xlu0 %26
    %v28 = vsub.f32 %v12, %v16
    %v29 = vmul.f32 %v28, 1.442695
    %v30 = vpow.pop %v29
    %v31 = vsel %vm13, %v30, 0.0
    %32 = vadd.xlane.f32.xlu0 %v31
    %v33 = vpop.xlane.xlu0 %32
    %v34 = vlog2.pop %v33
    %v35 = vmul.f32 %v34, 0.6931472
    %v36 = vadd.f32 %v16, %v35
    %v37 = vsub.f32 %v27, %v36
    %v38 = vmul.f32 %v37, 0.7
    %v39 = vmul.f32 %v38, 1.442695
    %v40 = vpow.pop %v39
    %v41 = vsub.f32 1.0, %v40
    %v42 = vmul.f32 %v41, 1.4285715
    %s43 = smul.u32 0, 8
    %v44 = vlaneseq
    %v45 = vshrl.u32 %v44, 7
    %v46 = vstv %s43
    %v47 = vadd.s32 %v46, %v45
    %vm48 = vcmp.lt.s32.totalorder %v47, 8
    %v49 = vsel %vm48, %v42, 0.0
    %vm50 = vcmask 7168
    %v51 = vsel %vm50, %v49, 0.0
    %52 = vadd.xlane.f32.xlu0 %v51
    %v53 = vpop.xlane.xlu0 %52
    %v54 = vrot.slane %v53, 4
    %v55 = vadd.f32 %v53, %v54
    %v56 = vrot.slane %v55, 2
    %v57 = vadd.f32 %v55, %v56
    %v58 = vrot.slane %v57, 1
    %v59 = vadd.f32 %v57, %v58
    %s60 = vtos %v59
    %s61 = scalar_lea.smem [#allocation2], 0
    %62 = sst [smem:[%s61]] %s60
    // Predicated region
    $region10: #{tpu_custom_call.1} parent=1 // pred_check
      _
    $region11: #{tpu_custom_call.1} parent=1 // pred_check_branch
      %64 = sbr.rel (0) target = $region13
    $region12: #{tpu_custom_call.1} parent=1 // pred_region
      %66 = vsyncadd [#allocation3], 0
      %s68 = sshll.u32 %s2, 4
      %s69 = int_to_ptr.hbm [resolvable:$true] %s68
      %71 = dma.smem_to_hbm [#allocation2], 16, %s69, [#allocation3]
    $region13: #{tpu_custom_call.1} parent=1 // pred_fallthru
      _
    // Predicated region
    $region14: #{tpu_custom_call.1} parent=1 // pred_check
      _
    $region15: #{tpu_custom_call.1} parent=1 // pred_check_branch
      %73 = sbr.rel (0) target = $region17
    $region16: #{tpu_custom_call.1} parent=1 // pred_region
      %75 = dma.done [#allocation3], 16
    $region17: #{tpu_custom_call.1} parent=1 // pred_fallthru
      _
    %76 = sfence
    %77 = vsyncpa [#allocation3], 1

</llo_original>
